<compile_context>
chip_gen: v7x
topology: tpu7x:2x2x1
jax: 0.10.0
libtpu: 0.0.40
codegen_flags: <defaults>
</compile_context>

<pallas_src>
import jax
import jax.numpy as jnp
import numpy as np
from jax.experimental import pallas as pl
from jax.experimental.pallas import tpu as pltpu

_MIB = 1024 * 1024


def _round_up(a, b):
    return (a + b - 1) // b * b


def _maxpool_kernel(x_ref, sel_ref, o_ref):
    # x_ref  : (tile_r, 2*W)  -- row r = the two H-rows of window-row r
    # sel_ref: (W, 2*Wo)      -- 0/1 selection: col j<Wo picks 2j, col Wo+j picks 2j+1
    # o_ref  : (tile_r, Wo)
    x = x_ref[...]
    w = x.shape[-1] // 2
    # dh reduction: max over the two H-rows (contiguous lane slices, VPU).
    y = jnp.maximum(x[:, :w], x[:, w:]).astype(jnp.float32)
    # dw extraction: even/odd-W columns via constant selection matmul (MXU).
    z = jnp.dot(y, sel_ref[...], preferred_element_type=jnp.float32)
    wo = z.shape[-1] // 2
    o_ref[...] = jnp.maximum(z[:, :wo], z[:, wo:]).astype(o_ref.dtype)


def maxpool2d(x):
    """2x2 max pool, stride 2, NCHW in/out (PyTorch MaxPool2d.forward)."""
    n, c, H, W = x.shape
    assert H % 2 == 0 and W % 2 == 0, "only kernel=2 / stride=2 with even H, W"
    Ho, Wo = H // 2, W // 2
    R = n * c * Ho
    itemsize = jnp.dtype(x.dtype).itemsize

    # Zero-copy view: row r holds the 2*W contiguous elements of window-row r.
    xr = x.reshape(R, 2 * W)

    # Constant 0/1 selection matrix for the even/odd-W split (finite inputs).
    sel_np = np.zeros((W, 2 * Wo), dtype=np.float32)
    sel_np[2 * np.arange(Wo), np.arange(Wo)] = 1.0
    sel_np[2 * np.arange(Wo) + 1, Wo + np.arange(Wo)] = 1.0
    sel = jnp.asarray(sel_np)

    # --- generation-aware tiling / VMEM budget ---
    target_in_bytes = 4 * _MIB        # safe default for v7x (64 MiB VMEM)
    vmem_budget = 32 * _MIB
    try:
        if pltpu.get_tpu_info().vmem_capacity_bytes >= 100 * _MIB:  # v5e / v6e
            target_in_bytes = 8 * _MIB
            vmem_budget = 64 * _MIB
    except Exception:
        pass

    # VMEM rows are lane-padded to multiples of 128.
    in_row_vmem = _round_up(2 * W, 128) * itemsize
    out_row_vmem = _round_up(Wo, 128) * itemsize

    tile_r = min(R, max(1, target_in_bytes // in_row_vmem))
    # v7x has 2 TensorCores: keep >= 2 "parallel" grid steps for real inputs.
    if R * 2 * W * itemsize > _MIB and R >= 16:
        tile_r = min(tile_r, pl.cdiv(R, 2))
    if tile_r >= 8:
        tile_r -= tile_r % 8          # packing-friendly second-to-last dim
    elif R >= 8:
        tile_r = 8
    else:
        tile_r = R                    # tiny input: one full block
    grid = pl.cdiv(R, tile_r)

    work = 2 * tile_r * (in_row_vmem + out_row_vmem) + sel.size * 4
    vmem_limit = int(min(vmem_budget, max(16 * _MIB, 2 * work)))

    out2d = pl.pallas_call(
        _maxpool_kernel,
        out_shape=jax.ShapeDtypeStruct((R, Wo), x.dtype),
        grid_spec=pltpu.PrefetchScalarGridSpec(
            num_scalar_prefetch=0,
            grid=(grid,),
            in_specs=[
                pl.BlockSpec((tile_r, 2 * W), lambda i: (i, 0)),
                pl.BlockSpec((W, 2 * Wo), lambda i: (0, 0)),
            ],
            out_specs=pl.BlockSpec((tile_r, Wo), lambda i: (i, 0)),
        ),
        compiler_params=pltpu.CompilerParams(
            dimension_semantics=("parallel",),
            vmem_limit_bytes=vmem_limit,
        ),
    )(xr, sel)

    return out2d.reshape(n, c, Ho, Wo)


if __name__ == "__main__":
    key = jax.random.PRNGKey(0)
    # batch=2, channels=4, spatial=16x16 (NCHW), matching the PyTorch module.
    x = jax.random.normal(key, (2, 4, 16, 16), dtype=jnp.float32)

    y = jax.jit(maxpool2d)(x)
    y = jax.block_until_ready(y)

    # Pure-JAX reference for correctness.
    ref = jnp.max(x.reshape(2, 4, 8, 2, 8, 2), axis=(3, 5))
    assert y.shape == (2, 4, 8, 8)
    assert y.dtype == x.dtype
    assert jnp.allclose(y, ref), "mismatch vs reference maxpool"

    print("KERNEL_OK")
</pallas_src>

<mosaic_0001>
module attributes {stable_mosaic.version = 11 : i64} {
  func.func @_maxpool_kernel(%arg0: i32, %arg1: memref<64x32xf32, #tpu.memory_space<vmem>>, %arg2: memref<16x16xf32, #tpu.memory_space<vmem>>, %arg3: memref<64x8xf32, #tpu.memory_space<vmem>>) attributes {dimension_semantics = [#tpu.dimension_semantics<parallel>], iteration_bounds = array<i64: 1>, scalar_prefetch = 0 : i64, scratch_operands = 0 : i64, tpu.core_type = #tpu.core_type<tc>, window_params = [{transform_indices = @transform_0, window_bounds = array<i64: 64, 32>}, {pipeline_mode = #tpu.pipeline_mode<synchronous>, transform_indices = @transform_1, window_bounds = array<i64: 16, 16>}, {transform_indices = @transform_2, window_bounds = array<i64: 64, 8>}]} {
    %c0 = arith.constant 0 : index
    %c0_0 = arith.constant 0 : index
    %0 = vector.load %arg1[%c0, %c0_0] : memref<64x32xf32, #tpu.memory_space<vmem>>, vector<64x32xf32>
    %1 = vector.extract_strided_slice %0 {offsets = [0, 0], sizes = [64, 16], strides = [1, 1]} : vector<64x32xf32> to vector<64x16xf32>
    %2 = vector.extract_strided_slice %0 {offsets = [0, 16], sizes = [64, 16], strides = [1, 1]} : vector<64x32xf32> to vector<64x16xf32>
    %3 = arith.maximumf %1, %2 : vector<64x16xf32>
    %c0_1 = arith.constant 0 : index
    %c0_2 = arith.constant 0 : index
    %4 = vector.load %arg2[%c0_1, %c0_2] : memref<16x16xf32, #tpu.memory_space<vmem>>, vector<16x16xf32>
    %cst = arith.constant dense<0.000000e+00> : vector<64x16xf32>
    %5 = tpu.matmul %3, %4, %cst {dimension_numbers = #tpu.dot_dimension_numbers<[1], [0], [0], [1], [0, 0, 1, 1], [], []>} : vector<64x16xf32>, vector<16x16xf32>, vector<64x16xf32> -> vector<64x16xf32>
    %6 = vector.extract_strided_slice %5 {offsets = [0, 0], sizes = [64, 8], strides = [1, 1]} : vector<64x16xf32> to vector<64x8xf32>
    %7 = vector.extract_strided_slice %5 {offsets = [0, 8], sizes = [64, 8], strides = [1, 1]} : vector<64x16xf32> to vector<64x8xf32>
    %8 = arith.maximumf %6, %7 : vector<64x8xf32>
    %c0_3 = arith.constant 0 : index
    %c0_4 = arith.constant 0 : index
    %9 = vector.load %arg3[%c0_3, %c0_4] : memref<64x8xf32, #tpu.memory_space<vmem>>, vector<64x8xf32>
    tpu.vector_store %arg3[%c0_3, %c0_4], %8 {strides = array<i32>} : memref<64x8xf32, #tpu.memory_space<vmem>>, vector<64x8xf32>,
    return
  }
  func.func @transform_0(%arg0: i32) -> (i32, i32) {
    %c0_i32 = arith.constant 0 : i32
    %c0_i32_0 = arith.constant 0 : i32
    return %arg0, %c0_i32 : i32, i32
  }
  func.func @transform_1(%arg0: i32) -> (i32, i32) {
    %c0_i32 = arith.constant 0 : i32
    %c0_i32_0 = arith.constant 0 : i32
    %c0_i32_1 = arith.constant 0 : i32
    return %c0_i32, %c0_i32_0 : i32, i32
  }
  func.func @transform_2(%arg0: i32) -> (i32, i32) {
    %c0_i32 = arith.constant 0 : i32
    %c0_i32_0 = arith.constant 0 : i32
    return %arg0, %c0_i32 : i32, i32
  }
}

</mosaic_0001>

<llo_original>
// kernel: maxpool2d.1
$region0: #{maxpool2d.1}
  #allocation0 [shape = 'u32[]', space=smem, size = 0x4, offset = 0x4, fixed_abs, tag = 'smem constant byte address 0x4 - core index']
  #allocation1 [shape = 'u32[144,128]{1,0:T(1,128)}', space=vmem, size = 0x12000, scoped, tag = 'internal scratch']
  %s0 = inlined_call_operand.vmem [shape: f32[64,32], index: 0, kind: input, shape index: {}]
  %s1 = inlined_call_operand.vmem [shape: f32[16,16], index: 1, kind: input, shape index: {}]
  %s2 = inlined_call_operand.hbm [shape: f32[64,8], index: 2, kind: output, shape index: {}]
  %s3 = sld [smem:[#allocation0]]
  $region18: #{maxpool2d.1} parent=0
    _
  %s5 = ssub.s32 1, %s3
  %s6 = scalar_select 0, %s5, %s3
  $region1: #{maxpool2d.1} parent=0
    #allocation2 [shape = 'u8[32768]{0}', space=vmem, size = 0x8000, scoped, tag = 'output window, operand 0, single buffered']
    #allocation3 [shape = 's32[1]{0}', space=sflag, size = 0x4, scoped, tag = 'scoped memory for maxpool2d.1']
    %7 = vsyncpa [#allocation3], 0
    // Predicated region
    $region2: #{maxpool2d.1} parent=1 // pred_check
      _
    $region3: #{maxpool2d.1} parent=1 // pred_check_branch
      %9 = sbr.rel (0) target = $region5
    $region4: #{maxpool2d.1} parent=1 // pred_region
      _
    $region5: #{maxpool2d.1} parent=1 // pred_fallthru
      _
    // Predicated region
    $region6: #{maxpool2d.1} parent=1 // pred_check
      _
    $region7: #{maxpool2d.1} parent=1 // pred_check_branch
      %11 = sbr.rel (0) target = $region9
    $region8: #{maxpool2d.1} parent=1 // pred_region
      _
    $region9: #{maxpool2d.1} parent=1 // pred_fallthru
      _
    %v12 = vld [vmem:[%s0] sm:$0xff]
    %v13 = vld [vmem:[%s0 + $0x8] sm:$0xff]
    %v14 = vld [vmem:[%s0 + $0x10] sm:$0xff]
    %v15 = vld [vmem:[%s0 + $0x18] sm:$0xff]
    %v16 = vld [vmem:[%s0 + $0x20] sm:$0xff]
    %v17 = vld [vmem:[%s0 + $0x28] sm:$0xff]
    %v18 = vld [vmem:[%s0 + $0x30] sm:$0xff]
    %v19 = vld [vmem:[%s0 + $0x38] sm:$0xff]
    %28 = vrot.lane.b32.xlu0 %v12, 112
    %v29 = vpop.permute.xlu0 %28
    %30 = vrot.lane.b32.xlu0 %v13, 112
    %v31 = vpop.permute.xlu0 %30
    %32 = vrot.lane.b32.xlu0 %v14, 112
    %v33 = vpop.permute.xlu0 %32
    %34 = vrot.lane.b32.xlu0 %v15, 112
    %v35 = vpop.permute.xlu0 %34
    %36 = vrot.lane.b32.xlu0 %v16, 112
    %v37 = vpop.permute.xlu0 %36
    %38 = vrot.lane.b32.xlu0 %v17, 112
    %v39 = vpop.permute.xlu0 %38
    %40 = vrot.lane.b32.xlu0 %v18, 112
    %v41 = vpop.permute.xlu0 %40
    %42 = vrot.lane.b32.xlu0 %v19, 112
    %v43 = vpop.permute.xlu0 %42
    %v52 = vmax.f32 %v12, %v29
    %v53 = vmax.f32 %v13, %v31
    %v54 = vmax.f32 %v14, %v33
    %v55 = vmax.f32 %v15, %v35
    %v56 = vmax.f32 %v16, %v37
    %v57 = vmax.f32 %v17, %v39
    %v58 = vmax.f32 %v18, %v41
    %v59 = vmax.f32 %v19, %v43
    %v60 = vld [vmem:[%s1] sm:$0xff]
    %v61 = vld [vmem:[%s1 + $0x8] sm:$0xff]
    %vm62 = vcmask 130048
    %v64 = vsel %vm62, %v52, 0
    %v67 = vsel %vm62, %v53, 0
    %v70 = vsel %vm62, %v54, 0
    %v73 = vsel %vm62, %v55, 0
    %v76 = vsel %vm62, %v56, 0
    %v79 = vsel %vm62, %v57, 0
    %v82 = vsel %vm62, %v58, 0
    %v85 = vsel %vm62, %v59, 0
    %87 = vmatprep.subr.mxu0 0.0
    %88 = vmatpush1.msra.mxu0 %v60
    %89 = vmatprep.subr.mxu0 0.0
    %90 = vmatpush1.msra.mxu0 %v61
    %91 = vmatprep.subr.mxu0 0.0
    %92 = vmatpush1.msra.mxu0 0.0
    %93 = vmatprep.subr.mxu0 0.0
    %94 = vmatpush1.msra.mxu0 0.0
    %95 = vmatprep.subr.mxu0 0.0
    %96 = vmatpush1.msra.mxu0 0.0
    %97 = vmatprep.subr.mxu0 0.0
    %98 = vmatpush1.msra.mxu0 0.0
    %99 = vmatprep.subr.mxu0 0.0
    %100 = vmatpush1.msra.mxu0 0.0
    %101 = vmatprep.subr.mxu0 0.0
    %102 = vmatpush1.msra.mxu0 0.0
    %103 = vmatprep.subr.mxu0 0.0
    %104 = vmatpush1.msra.mxu0 0.0
    %105 = vmatprep.subr.mxu0 0.0
    %106 = vmatpush1.msra.mxu0 0.0
    %107 = vmatprep.subr.mxu0 0.0
    %108 = vmatpush1.msra.mxu0 0.0
    %109 = vmatprep.subr.mxu0 0.0
    %110 = vmatpush1.msra.mxu0 0.0
    %111 = vmatprep.subr.mxu0 0.0
    %112 = vmatpush1.msra.mxu0 0.0
    %113 = vmatprep.subr.mxu0 0.0
    %114 = vmatpush1.msra.mxu0 0.0
    %115 = vmatprep.subr.mxu0 0.0
    %116 = vmatpush1.msra.mxu0 0.0
    %117 = vmatprep.subr.mxu0 0.0
    %118 = vmatpush1.msra.mxu0 0.0
    %119 = vmatprep.subr.mxu0 0.0
    %120 = vmatpush1.msra.mxu0 0.0
    %121 = vmatprep.subr.mxu0 0.0
    %122 = vmatpush1.msra.mxu0 0.0
    %123 = vmatprep.subr.mxu0 0.0
    %124 = vmatpush1.msra.mxu0 0.0
    %125 = vmatprep.subr.mxu0 0.0
    %126 = vmatpush1.msra.mxu0 0.0
    %127 = vmatprep.subr.mxu0 0.0
    %128 = vmatpush1.msra.mxu0 0.0
    %129 = vmatprep.subr.mxu0 0.0
    %130 = vmatpush1.msra.mxu0 0.0
    %131 = vmatprep.subr.mxu0 0.0
    %132 = vmatpush1.msra.mxu0 0.0
    %133 = vmatprep.subr.mxu0 0.0
    %134 = vmatpush1.msra.mxu0 0.0
    %135 = vmatprep.subr.mxu0 0.0
    %136 = vmatpush1.msra.mxu0 0.0
    %137 = vmatprep.subr.mxu0 0.0
    %138 = vmatpush1.msra.mxu0 0.0
    %139 = vmatprep.subr.mxu0 0.0
    %140 = vmatpush1.msra.mxu0 0.0
    %141 = vmatprep.subr.mxu0 0.0
    %142 = vmatpush1.msra.mxu0 0.0
    %143 = vmatprep.subr.mxu0 0.0
    %144 = vmatpush1.msra.mxu0 0.0
    %145 = vmatprep.subr.mxu0 0.0
    %146 = vmatpush1.msra.mxu0 0.0
    %147 = vmatprep.subr.mxu0 0.0
    %148 = vmatpush1.msra.mxu0 0.0
    %149 = vmatprep.subr.mxu0 0.0
    %150 = vmatpush1.msra.mxu0 0.0
    %151 = vmatprep.mubr.f32.mxu0 0.0
    %152 = vmatmul.mubr.f32.gmra.mrb[0].mxu0 %v64
    %v153 = vpop.f32.mrb[0].mxu0
    %v154 = vadd.f32 0.0, %v153
    %v155 = vpop.f32.mrb[0].mxu0
    %156 = vmatprep.mubr.f32.mxu0 0.0
    %157 = vmatmul.mubr.f32.gmra.mrb[0].mxu0 %v67
    %v158 = vpop.f32.mrb[0].mxu0
    %v159 = vadd.f32 0.0, %v158
    %v160 = vpop.f32.mrb[0].mxu0
    %161 = vmatprep.mubr.f32.mxu0 0.0
    %162 = vmatmul.mubr.f32.gmra.mrb[0].mxu0 %v70
    %v163 = vpop.f32.mrb[0].mxu0
    %v164 = vadd.f32 0.0, %v163
    %v165 = vpop.f32.mrb[0].mxu0
    %166 = vmatprep.mubr.f32.mxu0 0.0
    %167 = vmatmul.mubr.f32.gmra.mrb[0].mxu0 %v73
    %v168 = vpop.f32.mrb[0].mxu0
    %v169 = vadd.f32 0.0, %v168
    %v170 = vpop.f32.mrb[0].mxu0
    %171 = vmatprep.mubr.f32.mxu0 0.0
    %172 = vmatmul.mubr.f32.gmra.mrb[0].mxu0 %v76
    %v173 = vpop.f32.mrb[0].mxu0
    %v174 = vadd.f32 0.0, %v173
    %v175 = vpop.f32.mrb[0].mxu0
    %176 = vmatprep.mubr.f32.mxu0 0.0
    %177 = vmatmul.mubr.f32.gmra.mrb[0].mxu0 %v79
    %v178 = vpop.f32.mrb[0].mxu0
    %v179 = vadd.f32 0.0, %v178
    %v180 = vpop.f32.mrb[0].mxu0
    %181 = vmatprep.mubr.f32.mxu0 0.0
    %182 = vmatmul.mubr.f32.gmra.mrb[0].mxu0 %v82
    %v183 = vpop.f32.mrb[0].mxu0
    %v184 = vadd.f32 0.0, %v183
    %v185 = vpop.f32.mrb[0].mxu0
    %186 = vmatprep.mubr.f32.mxu0 0.0
    %187 = vmatmul.mubr.f32.gmra.mrb[0].mxu0 %v85
    %v188 = vpop.f32.mrb[0].mxu0
    %v189 = vadd.f32 0.0, %v188
    %v190 = vpop.f32.mrb[0].mxu0
    %191 = vdwg.mxu0
    %200 = vrot.lane.b32.xlu0 %v154, 120
    %v201 = vpop.permute.xlu0 %200
    %202 = vrot.lane.b32.xlu0 %v159, 120
    %v203 = vpop.permute.xlu0 %202
    %204 = vrot.lane.b32.xlu0 %v164, 120
    %v205 = vpop.permute.xlu0 %204
    %206 = vrot.lane.b32.xlu0 %v169, 120
    %v207 = vpop.permute.xlu0 %206
    %208 = vrot.lane.b32.xlu0 %v174, 120
    %v209 = vpop.permute.xlu0 %208
    %210 = vrot.lane.b32.xlu0 %v179, 120
    %v211 = vpop.permute.xlu0 %210
    %212 = vrot.lane.b32.xlu0 %v184, 120
    %v213 = vpop.permute.xlu0 %212
    %214 = vrot.lane.b32.xlu0 %v189, 120
    %v215 = vpop.permute.xlu0 %214
    %v224 = vmax.f32 %v154, %v201
    %v225 = vmax.f32 %v159, %v203
    %v226 = vmax.f32 %v164, %v205
    %v227 = vmax.f32 %v169, %v207
    %v228 = vmax.f32 %v174, %v209
    %v229 = vmax.f32 %v179, %v211
    %v230 = vmax.f32 %v184, %v213
    %v231 = vmax.f32 %v189, %v215
    %vm232 = vcmask 64512
    %233 = vst.msk [vmem:[#allocation2] sm:$0xff] %vm232, %v224
    %234 = vst.msk [vmem:[#allocation2 + $0x8] sm:$0xff] %vm232, %v225
    %235 = vst.msk [vmem:[#allocation2 + $0x10] sm:$0xff] %vm232, %v226
    %236 = vst.msk [vmem:[#allocation2 + $0x18] sm:$0xff] %vm232, %v227
    %237 = vst.msk [vmem:[#allocation2 + $0x20] sm:$0xff] %vm232, %v228
    %238 = vst.msk [vmem:[#allocation2 + $0x28] sm:$0xff] %vm232, %v229
    %239 = vst.msk [vmem:[#allocation2 + $0x30] sm:$0xff] %vm232, %v230
    %240 = vst.msk [vmem:[#allocation2 + $0x38] sm:$0xff] %vm232, %v231
    // Predicated region
    $region10: #{maxpool2d.1} parent=1 // pred_check
      _
    $region11: #{maxpool2d.1} parent=1 // pred_check_branch
      %242 = sbr.rel (0) target = $region13
    $region12: #{maxpool2d.1} parent=1 // pred_region
      %s244 = ssub.s32 1024, 1024
      %245 = vsyncadd [#allocation3], %s244
      %s246 = sshll.u32 [#allocation2], 4
      %s247 = int_to_ptr.vmem [resolvable:$true] %s246
      %252 = dma.vmem_to_hbm [thread:$0]  %s247, 1024, %s2, [#allocation3], 128, 128, 8
    $region13: #{maxpool2d.1} parent=1 // pred_fallthru
      _
    // Predicated region
    $region14: #{maxpool2d.1} parent=1 // pred_check
      _
    $region15: #{maxpool2d.1} parent=1 // pred_check_branch
      %254 = sbr.rel (0) target = $region17
    $region16: #{maxpool2d.1} parent=1 // pred_region
      %255 = dma.done [#allocation3], 1024
    $region17: #{maxpool2d.1} parent=1 // pred_fallthru
      _
    %256 = vsyncpa [#allocation3], 1

</llo_original>
